<compile_context>
chip_gen: v7x
topology: tpu7x:2x2x1
jax: 0.10.0
libtpu: 0.0.40
codegen_flags: <defaults>
</compile_context>

<pallas_src>
import jax
import jax.numpy as jnp
from jax.experimental import pallas as pl
from jax.experimental.pallas import tpu as pltpu


def _make_attention_kernel(k_views):
    """Kernel over one row-tile of N; the K views arrive as separate refs."""

    def kernel(*refs):
        w_ref = refs[0]                       # (1, C)   Linear(C, 1) weight
        x_refs = refs[1:1 + k_views]          # K x (TN, C)
        o_ref = refs[1 + k_views]             # (TN, C)

        w = w_ref[...].astype(jnp.float32)    # (1, C)

        # Per-view logits  <x[n, :], w>  -> (TN, 1).
        # The Linear bias is NOT added: it is identical for every view and
        # cancels exactly in the softmax over the K views.
        logits = [
            jnp.sum(x_refs[k][...].astype(jnp.float32) * w, axis=-1, keepdims=True)
            for k in range(k_views)
        ]

        # Numerically stable softmax over the statically unrolled view axis.
        m = logits[0]
        for lk in logits[1:]:
            m = jnp.maximum(m, lk)
        es = [jnp.exp(lk - m) for lk in logits]
        denom = es[0]
        for e in es[1:]:
            denom = denom + e
        inv = 1.0 / denom                     # exact; kernel is DMA-bound anyway

        # Weighted sum over views.  Views are re-read from VMEM here instead of
        # keeping all K upcast f32 copies live (VMEM reloads are cheap).
        out = (es[0] * inv) * x_refs[0][...].astype(jnp.float32)
        for k in range(1, k_views):
            out = out + (es[k] * inv) * x_refs[k][...].astype(jnp.float32)
        o_ref[...] = out.astype(o_ref.dtype)

    return kernel


def _pick_tile_n(n, k, c, itemsize):
    # Small N: one block covering the full dim (always a legal block shape).
    if n <= 512:
        return n
    # Cap rows so double-buffered I/O blocks + in-kernel f32 temporaries stay
    # far under the per-core VMEM budget (v7x: 64 MiB/TC) and the grid keeps
    # several steps for pipelining / 2-TC balance.
    budget = 4 << 20
    per_row = (2 * (k + 1) * itemsize + (k + 3) * 4) * c
    tn = (budget // max(per_row, 1)) // 8 * 8
    return int(max(8, min(512, tn)))


def attention_forward(inputs, weight, bias=None, *, tile_n=None):
    """Forward of the Attention module.

    inputs: list/tuple of K arrays of shape (N, C) (or a stacked (N, K, C) array).
    weight: (C,) or (1, C) Linear weight.
    bias:   scalar Linear bias; accepted for API parity but unused (it cancels
            exactly in the softmax over the K views).
    Returns (N, C).
    """
    if isinstance(inputs, (list, tuple)):
        views = list(inputs)
    else:
        views = [inputs[:, k, :] for k in range(inputs.shape[1])]
    k_views = len(views)
    n, c = views[0].shape
    for v in views:
        assert v.shape == (n, c), "all views must share the same (N, C) shape"
    dtype = views[0].dtype
    itemsize = views[0].dtype.itemsize

    del bias  # cancels in the softmax over views; see kernel comment

    if tile_n is None:
        tile_n = _pick_tile_n(n, k_views, c, itemsize)
    tile_n = int(min(tile_n, n))
    if tile_n < n:
        tile_n = max(8, (tile_n // 8) * 8)    # sublane multiple when tiling
    grid = (pl.cdiv(n, tile_n),)

    w2d = jnp.asarray(weight, jnp.float32).reshape(1, c)

    x_spec = pl.BlockSpec((tile_n, c), lambda i: (i, 0))
    in_specs = [pl.BlockSpec((1, c), lambda i: (0, 0))] + [x_spec] * k_views

    return pl.pallas_call(
        _make_attention_kernel(k_views),
        out_shape=jax.ShapeDtypeStruct((n, c), dtype),
        grid=grid,
        in_specs=in_specs,
        out_specs=pl.BlockSpec((tile_n, c), lambda i: (i, 0)),
        compiler_params=pltpu.CompilerParams(
            dimension_semantics=("parallel",)),
    )(w2d, *views)


def _reference(views, weight, bias):
    stacked = jnp.stack(views, axis=1)                                  # (N, K, C)
    logits = jnp.einsum("nkc,c->nk", stacked,
                        jnp.asarray(weight, jnp.float32)) + bias        # (N, K)
    attn = jax.nn.softmax(logits, axis=1)
    return jnp.sum(stacked * attn[:, :, None], axis=1)                  # (N, C)


if __name__ == "__main__":
    root = jax.random.PRNGKey(0)
    k_case1, k_case2 = jax.random.split(root)

    # --- Case 1: shapes matching the UDAGCN demo (K=2 GCN views), single block ---
    N, K, C = 16, 2, 32
    ks = jax.random.split(k_case1, K + 2)
    views = [jax.random.normal(ks[i], (N, C), jnp.float32) for i in range(K)]
    bound = float(C) ** -0.5
    weight = jax.random.uniform(ks[K], (C,), jnp.float32, -bound, bound)
    bias = jax.random.uniform(ks[K + 1], (), jnp.float32, -bound, bound)

    out = jax.block_until_ready(attention_forward(views, weight, bias))
    ref = _reference(views, weight, bias)
    assert out.shape == (N, C)
    assert jnp.allclose(out, ref, atol=2e-3, rtol=2e-3), "mismatch vs reference (K=2)"

    # --- Case 2: ragged N, K=3, multi-step grid with a partial last block ---
    N2, K2, C2 = 300, 3, 48
    ks2 = jax.random.split(k_case2, K2 + 2)
    views2 = [jax.random.normal(ks2[i], (N2, C2), jnp.float32) for i in range(K2)]
    bound2 = float(C2) ** -0.5
    weight2 = jax.random.uniform(ks2[K2], (C2,), jnp.float32, -bound2, bound2)
    bias2 = jax.random.uniform(ks2[K2 + 1], (), jnp.float32, -bound2, bound2)

    out2 = jax.block_until_ready(
        attention_forward(views2, weight2, bias2, tile_n=128))
    ref2 = _reference(views2, weight2, bias2)
    assert out2.shape == (N2, C2)
    assert jnp.allclose(out2, ref2, atol=2e-3, rtol=2e-3), "mismatch vs reference (ragged N)"

    # TODO(synk): nn.Dropout(0.1) is defined in the module but unused in forward(); not applied.
    print("KERNEL_OK")
</pallas_src>

<mosaic_0001>
module attributes {stable_mosaic.version = 11 : i64} {
  func.func @kernel(%arg0: i32, %arg1: memref<1x32xf32, #tpu.memory_space<vmem>>, %arg2: memref<16x32xf32, #tpu.memory_space<vmem>>, %arg3: memref<16x32xf32, #tpu.memory_space<vmem>>, %arg4: memref<16x32xf32, #tpu.memory_space<vmem>>) attributes {dimension_semantics = [#tpu.dimension_semantics<parallel>], iteration_bounds = array<i64: 1>, scalar_prefetch = 0 : i64, scratch_operands = 0 : i64, tpu.core_type = #tpu.core_type<tc>, window_params = [{pipeline_mode = #tpu.pipeline_mode<synchronous>, transform_indices = @transform_0, window_bounds = array<i64: 1, 32>}, {transform_indices = @transform_1, window_bounds = array<i64: 16, 32>}, {transform_indices = @transform_2, window_bounds = array<i64: 16, 32>}, {transform_indices = @transform_3, window_bounds = array<i64: 16, 32>}]} {
    %c0 = arith.constant 0 : index
    %c0_0 = arith.constant 0 : index
    %0 = vector.load %arg1[%c0, %c0_0] : memref<1x32xf32, #tpu.memory_space<vmem>>, vector<1x32xf32>
    %c0_1 = arith.constant 0 : index
    %c0_2 = arith.constant 0 : index
    %1 = vector.load %arg2[%c0_1, %c0_2] : memref<16x32xf32, #tpu.memory_space<vmem>>, vector<16x32xf32>
    %2 = vector.broadcast %0 : vector<1x32xf32> to vector<16x32xf32>
    %3 = arith.mulf %1, %2 : vector<16x32xf32>
    %cst = arith.constant dense<0.000000e+00> : vector<16xf32>
    %4 = vector.multi_reduction <add>, %3, %cst [1] : vector<16x32xf32> to vector<16xf32>
    %5 = vector.shape_cast %4 : vector<16xf32> to vector<16x1xf32>
    %c0_3 = arith.constant 0 : index
    %c0_4 = arith.constant 0 : index
    %6 = vector.load %arg3[%c0_3, %c0_4] : memref<16x32xf32, #tpu.memory_space<vmem>>, vector<16x32xf32>
    %7 = vector.broadcast %0 : vector<1x32xf32> to vector<16x32xf32>
    %8 = arith.mulf %6, %7 : vector<16x32xf32>
    %cst_5 = arith.constant dense<0.000000e+00> : vector<16xf32>
    %9 = vector.multi_reduction <add>, %8, %cst_5 [1] : vector<16x32xf32> to vector<16xf32>
    %10 = vector.shape_cast %9 : vector<16xf32> to vector<16x1xf32>
    %11 = arith.maximumf %5, %10 : vector<16x1xf32>
    %12 = arith.subf %5, %11 : vector<16x1xf32>
    %13 = math.exp %12 : vector<16x1xf32>
    %14 = arith.subf %10, %11 : vector<16x1xf32>
    %15 = math.exp %14 : vector<16x1xf32>
    %16 = arith.addf %13, %15 : vector<16x1xf32>
    %cst_6 = arith.constant 1.000000e+00 : f32
    %17 = vector.broadcast %cst_6 : f32 to vector<16x1xf32>
    %18 = arith.divf %17, %16 : vector<16x1xf32>
    %19 = arith.mulf %13, %18 : vector<16x1xf32>
    %c0_7 = arith.constant 0 : index
    %c0_8 = arith.constant 0 : index
    %20 = vector.load %arg2[%c0_7, %c0_8] : memref<16x32xf32, #tpu.memory_space<vmem>>, vector<16x32xf32>
    %21 = vector.broadcast %19 : vector<16x1xf32> to vector<16x32xf32>
    %22 = arith.mulf %21, %20 : vector<16x32xf32>
    %23 = arith.mulf %15, %18 : vector<16x1xf32>
    %c0_9 = arith.constant 0 : index
    %c0_10 = arith.constant 0 : index
    %24 = vector.load %arg3[%c0_9, %c0_10] : memref<16x32xf32, #tpu.memory_space<vmem>>, vector<16x32xf32>
    %25 = vector.broadcast %23 : vector<16x1xf32> to vector<16x32xf32>
    %26 = arith.mulf %25, %24 : vector<16x32xf32>
    %27 = arith.addf %22, %26 : vector<16x32xf32>
    %c0_11 = arith.constant 0 : index
    %c0_12 = arith.constant 0 : index
    %28 = vector.load %arg4[%c0_11, %c0_12] : memref<16x32xf32, #tpu.memory_space<vmem>>, vector<16x32xf32>
    tpu.vector_store %arg4[%c0_11, %c0_12], %27 {strides = array<i32>} : memref<16x32xf32, #tpu.memory_space<vmem>>, vector<16x32xf32>,
    return
  }
  func.func @transform_0(%arg0: i32) -> (i32, i32) {
    %c0_i32 = arith.constant 0 : i32
    %c0_i32_0 = arith.constant 0 : i32
    %c0_i32_1 = arith.constant 0 : i32
    return %c0_i32, %c0_i32_0 : i32, i32
  }
  func.func @transform_1(%arg0: i32) -> (i32, i32) {
    %c0_i32 = arith.constant 0 : i32
    %c0_i32_0 = arith.constant 0 : i32
    return %arg0, %c0_i32 : i32, i32
  }
  func.func @transform_2(%arg0: i32) -> (i32, i32) {
    %c0_i32 = arith.constant 0 : i32
    %c0_i32_0 = arith.constant 0 : i32
    return %arg0, %c0_i32 : i32, i32
  }
  func.func @transform_3(%arg0: i32) -> (i32, i32) {
    %c0_i32 = arith.constant 0 : i32
    %c0_i32_0 = arith.constant 0 : i32
    return %arg0, %c0_i32 : i32, i32
  }
}

</mosaic_0001>

<llo_original>
// kernel: tpu_custom_call.1
$region0: #{tpu_custom_call.1}
  #allocation0 [shape = 'u32[]', space=smem, size = 0x4, offset = 0x4, fixed_abs, tag = 'smem constant byte address 0x4 - core index']
  #allocation1 [shape = 'u32[144,128]{1,0:T(1,128)}', space=vmem, size = 0x12000, scoped, tag = 'internal scratch']
  %s0 = inlined_call_operand.hbm [shape: f32[1,32], index: 0, kind: input, shape index: {}]
  %s1 = inlined_call_operand.hbm [shape: f32[16,32], index: 1, kind: input, shape index: {}]
  %s2 = inlined_call_operand.hbm [shape: f32[16,32], index: 2, kind: input, shape index: {}]
  %s3 = inlined_call_operand.hbm [shape: f32[16,32], index: 3, kind: output, shape index: {}]
  %s4 = sld [smem:[#allocation0]]
  $region34: #{tpu_custom_call.1} parent=0
    _
  %s6 = ssub.s32 1, %s4
  %s7 = scalar_select 0, %s6, %s4
  $region1: #{tpu_custom_call.1} parent=0
    #allocation2 [shape = 'u8[512]{0}', space=vmem, size = 0x400, scoped, tag = 'input window, operand 0, single buffered']
    #allocation3 [shape = 's32[1]{0}', space=sflag, size = 0x4, scoped, tag = 'scoped memory for tpu_custom_call.1']
    #allocation4 [shape = 's32[1]{0}', space=sflag, size = 0x4, scoped, tag = 'scoped memory for tpu_custom_call.1']
    #allocation5 [shape = 'u8[8192]{0}', space=vmem, size = 0x2000, scoped, tag = 'input window, operand 1, single buffered']
    #allocation6 [shape = 's32[1]{0}', space=sflag, size = 0x4, scoped, tag = 'scoped memory for tpu_custom_call.1']
    #allocation7 [shape = 'u8[8192]{0}', space=vmem, size = 0x2000, scoped, tag = 'input window, operand 2, single buffered']
    #allocation8 [shape = 'u8[8192]{0}', space=vmem, size = 0x2000, scoped, tag = 'output window, operand 0, single buffered']
    %8 = vsyncpa [#allocation3], 0
    %9 = vsyncpa [#allocation6], 0
    %10 = vsyncpa [#allocation4], 0
    // Predicated region
    $region2: #{tpu_custom_call.1} parent=1 // pred_check
      _
    $region3: #{tpu_custom_call.1} parent=1 // pred_check_branch
      %12 = sbr.rel (0) target = $region5
    $region4: #{tpu_custom_call.1} parent=1 // pred_region
      %s14 = ssub.s32 16, 16
      %15 = vsyncadd [#allocation3], %s14
      %s17 = sshll.u32 [#allocation2], 4
      %s18 = int_to_ptr.vmem [resolvable:$true] %s17
      %20 = dma.hbm_to_vmem [thread:$0]  %s0, 16, %s18, [#allocation3]
    $region5: #{tpu_custom_call.1} parent=1 // pred_fallthru
      _
    // Predicated region
    $region6: #{tpu_custom_call.1} parent=1 // pred_check
      _
    $region7: #{tpu_custom_call.1} parent=1 // pred_check_branch
      %22 = sbr.rel (0) target = $region9
    $region8: #{tpu_custom_call.1} parent=1 // pred_region
      %s24 = ssub.s32 256, 256
      %25 = vsyncadd [#allocation6], %s24
      %s26 = sshll.u32 [#allocation5], 4
      %s27 = int_to_ptr.vmem [resolvable:$true] %s26
      %32 = dma.hbm_to_vmem [thread:$0]  %s1, 256, %s27, [#allocation6], 128, 128, 8
    $region9: #{tpu_custom_call.1} parent=1 // pred_fallthru
      _
    // Predicated region
    $region10: #{tpu_custom_call.1} parent=1 // pred_check
      _
    $region11: #{tpu_custom_call.1} parent=1 // pred_check_branch
      %34 = sbr.rel (0) target = $region13
    $region12: #{tpu_custom_call.1} parent=1 // pred_region
      %s36 = ssub.s32 256, 256
      %37 = vsyncadd [#allocation6], %s36
      %s38 = sshll.u32 [#allocation7], 4
      %s39 = int_to_ptr.vmem [resolvable:$true] %s38
      %44 = dma.hbm_to_vmem [thread:$0]  %s2, 256, %s39, [#allocation6], 128, 128, 8
    $region13: #{tpu_custom_call.1} parent=1 // pred_fallthru
      _
    // Predicated region
    $region14: #{tpu_custom_call.1} parent=1 // pred_check
      _
    $region15: #{tpu_custom_call.1} parent=1 // pred_check_branch
      %46 = sbr.rel (0) target = $region17
    $region16: #{tpu_custom_call.1} parent=1 // pred_region
      %47 = dma.done [#allocation3], 16
    $region17: #{tpu_custom_call.1} parent=1 // pred_fallthru
      _
    // Predicated region
    $region18: #{tpu_custom_call.1} parent=1 // pred_check
      _
    $region19: #{tpu_custom_call.1} parent=1 // pred_check_branch
      %49 = sbr.rel (0) target = $region21
    $region20: #{tpu_custom_call.1} parent=1 // pred_region
      %50 = dma.done [#allocation6], 256
    $region21: #{tpu_custom_call.1} parent=1 // pred_fallthru
      _
    // Predicated region
    $region22: #{tpu_custom_call.1} parent=1 // pred_check
      _
    $region23: #{tpu_custom_call.1} parent=1 // pred_check_branch
      %52 = sbr.rel (0) target = $region25
    $region24: #{tpu_custom_call.1} parent=1 // pred_region
      %53 = dma.done [#allocation6], 256
    $region25: #{tpu_custom_call.1} parent=1 // pred_fallthru
      _
    %v54 = vld [vmem:[#allocation2] sm:$0x1]
    %v55 = vld [vmem:[#allocation5] sm:$0xff]
    %v56 = vld [vmem:[#allocation5 + $0x8] sm:$0xff]
    %v58 = vlaneseq
    %v59 = vshrl.u32 %v58, 7
    %v60 = vsub.s32 0, %v59
    %v61 = vrot.slane %v54, %v60
    %v63 = vmul.f32 %v55, %v61
    %v64 = vmul.f32 %v56, %v61
    %vm65 = vcmask 261120
    %v66 = vsel %vm65, %v63, 0.0
    %67 = vadd.xlane.f32.xlu0 %v66
    %v68 = vpop.xlane.xlu0 %67
    %v69 = vsel %vm65, %v64, 0.0
    %70 = vadd.xlane.f32.xlu0 %v69
    %v71 = vpop.xlane.xlu0 %70
    %v72 = vld [vmem:[#allocation7] sm:$0xff]
    %v73 = vld [vmem:[#allocation7 + $0x8] sm:$0xff]
    %v74 = vmul.f32 %v72, %v61
    %v75 = vmul.f32 %v73, %v61
    %v76 = vsel %vm65, %v74, 0.0
    %77 = vadd.xlane.f32.xlu0 %v76
    %v78 = vpop.xlane.xlu0 %77
    %v79 = vsel %vm65, %v75, 0.0
    %80 = vadd.xlane.f32.xlu0 %v79
    %v81 = vpop.xlane.xlu0 %80
    %v82 = vmax.f32 %v68, %v78
    %v83 = vmax.f32 %v71, %v81
    %v84 = vsub.f32 %v68, %v82
    %v85 = vsub.f32 %v71, %v83
    %v86 = vmul.f32 %v84, 1.442695
    %v87 = vpow.pop %v86
    %v88 = vmul.f32 %v85, 1.442695
    %v89 = vpow.pop %v88
    %v90 = vsub.f32 %v78, %v82
    %v91 = vsub.f32 %v81, %v83
    %v92 = vmul.f32 %v90, 1.442695
    %v93 = vpow.pop %v92
    %v94 = vmul.f32 %v91, 1.442695
    %v95 = vpow.pop %v94
    %v96 = vadd.f32 %v87, %v93
    %v97 = vadd.f32 %v89, %v95
    %v98 = vrcp.pop %v96
    %v99 = vmul.f32 1.0, %v98
    %v100 = vrcp.pop %v97
    %v101 = vmul.f32 1.0, %v100
    %v102 = vmul.f32 %v87, %v99
    %v103 = vmul.f32 %v89, %v101
    %v104 = vmul.f32 %v102, %v55
    %v105 = vmul.f32 %v103, %v56
    %v106 = vmul.f32 %v93, %v99
    %v107 = vmul.f32 %v95, %v101
    %v108 = vmul.f32 %v106, %v72
    %v109 = vmul.f32 %v107, %v73
    %v110 = vadd.f32 %v104, %v108
    %v111 = vadd.f32 %v105, %v109
    %112 = vst.msk [vmem:[#allocation8] sm:$0xff] %vm65, %v110
    %113 = vst.msk [vmem:[#allocation8 + $0x8] sm:$0xff] %vm65, %v111
    // Predicated region
    $region26: #{tpu_custom_call.1} parent=1 // pred_check
      _
    $region27: #{tpu_custom_call.1} parent=1 // pred_check_branch
      %115 = sbr.rel (0) target = $region29
    $region28: #{tpu_custom_call.1} parent=1 // pred_region
      %s117 = ssub.s32 256, 256
      %118 = vsyncadd [#allocation4], %s117
      %s119 = sshll.u32 [#allocation8], 4
      %s120 = int_to_ptr.vmem [resolvable:$true] %s119
      %125 = dma.vmem_to_hbm [thread:$0]  %s120, 256, %s3, [#allocation4], 128, 128, 8
    $region29: #{tpu_custom_call.1} parent=1 // pred_fallthru
      _
    // Predicated region
    $region30: #{tpu_custom_call.1} parent=1 // pred_check
      _
    $region31: #{tpu_custom_call.1} parent=1 // pred_check_branch
      %127 = sbr.rel (0) target = $region33
    $region32: #{tpu_custom_call.1} parent=1 // pred_region
      %128 = dma.done [#allocation4], 256
    $region33: #{tpu_custom_call.1} parent=1 // pred_fallthru
      _
    %129 = vsyncpa [#allocation3], 1
    %130 = vsyncpa [#allocation6], 1
    %131 = vsyncpa [#allocation4], 1

</llo_original>
